<compile_context>
chip_gen: v7x
topology: tpu7x:2x2x1
jax: 0.10.0
libtpu: 0.0.40
codegen_flags: <defaults>
</compile_context>

<pallas_src>
import functools

import jax
import jax.numpy as jnp
from jax.experimental import pallas as pl
from jax.experimental.pallas import tpu as pltpu

# ~2 MiB input blocks: measured mem-bound sweet spot (~85% HBM roofline) and
# small enough that 2x(in)+2x(out)+scratch stays under the default scoped-VMEM
# limit on v5e (16 MiB), v6e (32 MiB) and v7x (32 MiB of 64 MiB physical).
_TARGET_BLOCK_BYTES = 2 * 1024 * 1024


def _causal_conv1d_kernel(x_ref, w_ref, b_ref, y_ref, work_ref, *, kernel_size: int):
    """Depthwise causal conv over one (bb, tile_t, F) block.

    x_ref:    (bb, tile_t, F)          current time tile
    w_ref:    (KS, F)                  depthwise weights
    b_ref:    (1, F)                   bias
    y_ref:    (bb, tile_t, F)          output tile
    work_ref: (bb, tile_t + KS-1, F)   scratch: rows [0, pad) = carried halo,
                                       rows [pad, pad+tile_t) = current tile
    """
    pad = kernel_size - 1
    tile_t = y_ref.shape[1]

    if pad > 0:
        @pl.when(pl.program_id(1) == 0)
        def _():
            # Causal left zero-padding for the first time tile of this batch block.
            work_ref[:, :pad, :] = jnp.zeros(
                (work_ref.shape[0], pad, work_ref.shape[2]), work_ref.dtype
            )

    # Stage the current tile right behind the carried halo.
    work_ref[:, pad:, :] = x_ref[...]

    # Shifted multiply-accumulate over the KS taps (VPU work, f32 accumulate).
    w = w_ref[...].astype(jnp.float32)
    acc = jnp.zeros(y_ref.shape, jnp.float32)
    for k in range(kernel_size):
        acc = acc + work_ref[:, k:k + tile_t, :].astype(jnp.float32) * w[k]
    acc = acc + b_ref[...].astype(jnp.float32)
    y_ref[...] = acc.astype(y_ref.dtype)

    if pad > 0:
        # Carry the last KS-1 rows of the stream as the halo for the next tile.
        # (Read happens before the write, so this is also correct if tile_t < pad.)
        work_ref[:, :pad, :] = work_ref[:, tile_t:tile_t + pad, :]


def _pick_time_tile(T: int, max_rows: int) -> int:
    """Largest multiple-of-8 divisor of T that is <= max_rows (else full T)."""
    if T <= max_rows:
        return T
    t = (min(max_rows, T) // 8) * 8
    while t >= 8:
        if T % t == 0:
            return t
        t -= 8
    return T


def causal_conv1d(x, weight_kf, bias_f, *, time_tile=None, batch_block=None):
    """Causal depthwise conv1d forward.

    x:         (B, T, F)
    weight_kf: (KS, F)   == PyTorch conv.weight[:, 0, :].T
    bias_f:    (F,)
    returns    (B, T, F)
    """
    B, T, F = x.shape
    KS = int(weight_kf.shape[0])
    if KS == 0:
        # Matches CausalConv1d.forward with kernel_size == 0 (identity).
        return x
    pad = KS - 1
    itemsize = jnp.dtype(x.dtype).itemsize

    # Block sizing: fold the whole batch into one block for tiny problems,
    # otherwise tile time so each input block is ~_TARGET_BLOCK_BYTES.
    if batch_block is None:
        batch_block = B if B * T * F * itemsize <= _TARGET_BLOCK_BYTES else 1
    if time_tile is None:
        max_rows = max(8, _TARGET_BLOCK_BYTES // max(1, batch_block * F * itemsize))
        time_tile = _pick_time_tile(T, max_rows)
    assert B % batch_block == 0, (B, batch_block)
    assert T % time_tile == 0, (T, time_tile)

    bias_2d = bias_f.reshape(1, F)
    kernel = functools.partial(_causal_conv1d_kernel, kernel_size=KS)

    # TODO(synk): for F < 128, fold batch/time into the lane axis (lane-dense
    # output, avoids masked vst.msk partial stores); needs a wrapper-side
    # transpose, so it only pays off for large T.
    return pl.pallas_call(
        kernel,
        out_shape=jax.ShapeDtypeStruct((B, T, F), x.dtype),
        grid_spec=pltpu.PrefetchScalarGridSpec(
            num_scalar_prefetch=0,
            grid=(B // batch_block, T // time_tile),
            in_specs=[
                pl.BlockSpec((batch_block, time_tile, F), lambda b, t: (b, t, 0)),
                pl.BlockSpec((KS, F), lambda b, t: (0, 0)),
                pl.BlockSpec((1, F), lambda b, t: (0, 0)),
            ],
            out_specs=pl.BlockSpec(
                (batch_block, time_tile, F), lambda b, t: (b, t, 0)
            ),
            scratch_shapes=[
                pltpu.VMEM((batch_block, time_tile + pad, F), x.dtype),
            ],
        ),
        compiler_params=pltpu.CompilerParams(
            # Time axis carries the halo scratch across iterations -> "arbitrary";
            # batch axis shards across TensorCores (megacore) -> "parallel".
            dimension_semantics=("parallel", "arbitrary"),
        ),
    )(x, weight_kf, bias_2d)


def causal_conv1d_ref(x, weight_kf, bias_f):
    """Pure-JAX reference (mirrors nn.Conv1d depthwise causal forward)."""
    B, T, F = x.shape
    KS = weight_kf.shape[0]
    pad = KS - 1
    xp = jnp.pad(x.astype(jnp.float32), ((0, 0), (pad, 0), (0, 0)))
    y = jnp.zeros((B, T, F), jnp.float32)
    for k in range(KS):
        y = y + xp[:, k:k + T, :] * weight_kf[k].astype(jnp.float32)
    y = y + bias_f.astype(jnp.float32)
    return y.astype(x.dtype)


if __name__ == "__main__":
    key = jax.random.PRNGKey(0)

    # Case 1: module-default-like tiny config
    # (feature_dim=32, kernel_size=4, causal_conv_bias=True, depthwise).
    B, T, F, KS = 2, 8, 32, 4
    k1, k2, k3, key = jax.random.split(key, 4)
    bound = 1.0 / (KS ** 0.5)  # nn.Conv1d depthwise init bound = 1/sqrt(KS)
    x = jax.random.normal(k1, (B, T, F), dtype=jnp.float32)
    w = jax.random.uniform(k2, (KS, F), jnp.float32, -bound, bound)
    b = jax.random.uniform(k3, (F,), jnp.float32, -bound, bound)

    y = jax.block_until_ready(causal_conv1d(x, w, b))
    y_ref = causal_conv1d_ref(x, w, b)
    assert y.shape == (B, T, F)
    assert jnp.allclose(y, y_ref, atol=1e-5, rtol=1e-5), float(
        jnp.max(jnp.abs(y - y_ref))
    )

    # Case 2: exercise the time-tiled halo-carry path (multiple time tiles,
    # multiple batch blocks, bf16 I/O, lane-dense F=128).
    B2, T2, F2 = 2, 256, 128
    k1, k2, k3, key = jax.random.split(key, 4)
    x2 = jax.random.normal(k1, (B2, T2, F2), jnp.float32).astype(jnp.bfloat16)
    w2 = jax.random.uniform(k2, (KS, F2), jnp.float32, -bound, bound)
    b2 = jax.random.uniform(k3, (F2,), jnp.float32, -bound, bound)

    y2 = jax.block_until_ready(
        causal_conv1d(x2, w2, b2, time_tile=64, batch_block=1)
    )
    y2_ref = causal_conv1d_ref(x2, w2, b2)
    assert jnp.allclose(
        y2.astype(jnp.float32), y2_ref.astype(jnp.float32), atol=2e-2, rtol=2e-2
    ), float(jnp.max(jnp.abs(y2.astype(jnp.float32) - y2_ref.astype(jnp.float32))))

    print("KERNEL_OK")
</pallas_src>

<mosaic_0001>
module attributes {stable_mosaic.version = 11 : i64} {
  func.func @_causal_conv1d_kernel(%arg0: i32, %arg1: i32, %arg2: memref<2x8x32xf32, #tpu.memory_space<vmem>>, %arg3: memref<4x32xf32, #tpu.memory_space<vmem>>, %arg4: memref<1x32xf32, #tpu.memory_space<vmem>>, %arg5: memref<2x8x32xf32, #tpu.memory_space<vmem>>, %arg6: memref<2x11x32xf32, #tpu.memory_space<vmem>>) attributes {dimension_semantics = [#tpu.dimension_semantics<parallel>, #tpu.dimension_semantics<arbitrary>], iteration_bounds = array<i64: 1, 1>, scalar_prefetch = 0 : i64, scratch_operands = 1 : i64, tpu.core_type = #tpu.core_type<tc>, window_params = [{transform_indices = @transform_0, window_bounds = array<i64: 2, 8, 32>}, {pipeline_mode = #tpu.pipeline_mode<synchronous>, transform_indices = @transform_1, window_bounds = array<i64: 4, 32>}, {pipeline_mode = #tpu.pipeline_mode<synchronous>, transform_indices = @transform_2, window_bounds = array<i64: 1, 32>}, {transform_indices = @transform_3, window_bounds = array<i64: 2, 8, 32>}]} {
    %c0_i32 = arith.constant 0 : i32
    %0 = arith.cmpi eq, %arg1, %c0_i32 : i32
    %1 = arith.extui %0 : i1 to i32
    %c0_i32_0 = arith.constant 0 : i32
    %2 = arith.cmpi ne, %1, %c0_i32_0 : i32
    scf.if %2 {
      %cst_27 = arith.constant 0.000000e+00 : f32
      %42 = vector.broadcast %cst_27 : f32 to vector<2x3x32xf32>
      %c0_28 = arith.constant 0 : index
      %c0_29 = arith.constant 0 : index
      %c0_30 = arith.constant 0 : index
      %43 = vector.load %arg6[%c0_28, %c0_29, %c0_30] : memref<2x11x32xf32, #tpu.memory_space<vmem>>, vector<2x3x32xf32>
      tpu.vector_store %arg6[%c0_28, %c0_29, %c0_30], %42 {strides = array<i32>} : memref<2x11x32xf32, #tpu.memory_space<vmem>>, vector<2x3x32xf32>,
    } else {
    }
    %c0 = arith.constant 0 : index
    %c0_1 = arith.constant 0 : index
    %c0_2 = arith.constant 0 : index
    %3 = vector.load %arg2[%c0, %c0_1, %c0_2] : memref<2x8x32xf32, #tpu.memory_space<vmem>>, vector<2x8x32xf32>
    %c0_3 = arith.constant 0 : index
    %c3 = arith.constant 3 : index
    %c0_4 = arith.constant 0 : index
    %4 = vector.load %arg6[%c0_3, %c3, %c0_4] : memref<2x11x32xf32, #tpu.memory_space<vmem>>, vector<2x8x32xf32>
    tpu.vector_store %arg6[%c0_3, %c3, %c0_4], %3 {strides = array<i32>} : memref<2x11x32xf32, #tpu.memory_space<vmem>>, vector<2x8x32xf32>,
    %c0_5 = arith.constant 0 : index
    %c0_6 = arith.constant 0 : index
    %5 = vector.load %arg3[%c0_5, %c0_6] : memref<4x32xf32, #tpu.memory_space<vmem>>, vector<4x32xf32>
    %cst = arith.constant 0.000000e+00 : f32
    %6 = vector.broadcast %cst : f32 to vector<2x8x32xf32>
    %c0_7 = arith.constant 0 : index
    %c0_8 = arith.constant 0 : index
    %c0_9 = arith.constant 0 : index
    %7 = vector.load %arg6[%c0_7, %c0_8, %c0_9] : memref<2x11x32xf32, #tpu.memory_space<vmem>>, vector<2x8x32xf32>
    %8 = vector.extract_strided_slice %5 {offsets = [0, 0], sizes = [1, 32], strides = [1, 1]} : vector<4x32xf32> to vector<1x32xf32>
    %9 = vector.shape_cast %8 : vector<1x32xf32> to vector<32xf32>
    %10 = vector.shape_cast %9 : vector<32xf32> to vector<1x1x32xf32>
    %11 = vector.broadcast %10 : vector<1x1x32xf32> to vector<2x8x32xf32>
    %12 = arith.mulf %7, %11 : vector<2x8x32xf32>
    %13 = arith.addf %6, %12 : vector<2x8x32xf32>
    %c0_10 = arith.constant 0 : index
    %c1 = arith.constant 1 : index
    %c0_11 = arith.constant 0 : index
    %14 = vector.load %arg6[%c0_10, %c1, %c0_11] : memref<2x11x32xf32, #tpu.memory_space<vmem>>, vector<2x8x32xf32>
    %15 = vector.extract_strided_slice %5 {offsets = [1, 0], sizes = [1, 32], strides = [1, 1]} : vector<4x32xf32> to vector<1x32xf32>
    %16 = vector.shape_cast %15 : vector<1x32xf32> to vector<32xf32>
    %17 = vector.shape_cast %16 : vector<32xf32> to vector<1x1x32xf32>
    %18 = vector.broadcast %17 : vector<1x1x32xf32> to vector<2x8x32xf32>
    %19 = arith.mulf %14, %18 : vector<2x8x32xf32>
    %20 = arith.addf %13, %19 : vector<2x8x32xf32>
    %c0_12 = arith.constant 0 : index
    %c2 = arith.constant 2 : index
    %c0_13 = arith.constant 0 : index
    %21 = vector.load %arg6[%c0_12, %c2, %c0_13] : memref<2x11x32xf32, #tpu.memory_space<vmem>>, vector<2x8x32xf32>
    %22 = vector.extract_strided_slice %5 {offsets = [2, 0], sizes = [1, 32], strides = [1, 1]} : vector<4x32xf32> to vector<1x32xf32>
    %23 = vector.shape_cast %22 : vector<1x32xf32> to vector<32xf32>
    %24 = vector.shape_cast %23 : vector<32xf32> to vector<1x1x32xf32>
    %25 = vector.broadcast %24 : vector<1x1x32xf32> to vector<2x8x32xf32>
    %26 = arith.mulf %21, %25 : vector<2x8x32xf32>
    %27 = arith.addf %20, %26 : vector<2x8x32xf32>
    %c0_14 = arith.constant 0 : index
    %c3_15 = arith.constant 3 : index
    %c0_16 = arith.constant 0 : index
    %28 = vector.load %arg6[%c0_14, %c3_15, %c0_16] : memref<2x11x32xf32, #tpu.memory_space<vmem>>, vector<2x8x32xf32>
    %29 = vector.extract_strided_slice %5 {offsets = [3, 0], sizes = [1, 32], strides = [1, 1]} : vector<4x32xf32> to vector<1x32xf32>
    %30 = vector.shape_cast %29 : vector<1x32xf32> to vector<32xf32>
    %31 = vector.shape_cast %30 : vector<32xf32> to vector<1x1x32xf32>
    %32 = vector.broadcast %31 : vector<1x1x32xf32> to vector<2x8x32xf32>
    %33 = arith.mulf %28, %32 : vector<2x8x32xf32>
    %34 = arith.addf %27, %33 : vector<2x8x32xf32>
    %c0_17 = arith.constant 0 : index
    %c0_18 = arith.constant 0 : index
    %35 = vector.load %arg4[%c0_17, %c0_18] : memref<1x32xf32, #tpu.memory_space<vmem>>, vector<1x32xf32>
    %36 = vector.shape_cast %35 : vector<1x32xf32> to vector<1x1x32xf32>
    %37 = vector.broadcast %36 : vector<1x1x32xf32> to vector<2x8x32xf32>
    %38 = arith.addf %34, %37 : vector<2x8x32xf32>
    %c0_19 = arith.constant 0 : index
    %c0_20 = arith.constant 0 : index
    %c0_21 = arith.constant 0 : index
    %39 = vector.load %arg5[%c0_19, %c0_20, %c0_21] : memref<2x8x32xf32, #tpu.memory_space<vmem>>, vector<2x8x32xf32>
    tpu.vector_store %arg5[%c0_19, %c0_20, %c0_21], %38 {strides = array<i32>} : memref<2x8x32xf32, #tpu.memory_space<vmem>>, vector<2x8x32xf32>,
    %c0_22 = arith.constant 0 : index
    %c8 = arith.constant 8 : index
    %c0_23 = arith.constant 0 : index
    %40 = vector.load %arg6[%c0_22, %c8, %c0_23] : memref<2x11x32xf32, #tpu.memory_space<vmem>>, vector<2x3x32xf32>
    %c0_24 = arith.constant 0 : index
    %c0_25 = arith.constant 0 : index
    %c0_26 = arith.constant 0 : index
    %41 = vector.load %arg6[%c0_24, %c0_25, %c0_26] : memref<2x11x32xf32, #tpu.memory_space<vmem>>, vector<2x3x32xf32>
    tpu.vector_store %arg6[%c0_24, %c0_25, %c0_26], %40 {strides = array<i32>} : memref<2x11x32xf32, #tpu.memory_space<vmem>>, vector<2x3x32xf32>,
    return
  }
  func.func @transform_0(%arg0: i32, %arg1: i32) -> (i32, i32, i32) {
    %c0_i32 = arith.constant 0 : i32
    %c0_i32_0 = arith.constant 0 : i32
    return %arg0, %arg1, %c0_i32 : i32, i32, i32
  }
  func.func @transform_1(%arg0: i32, %arg1: i32) -> (i32, i32) {
    %c0_i32 = arith.constant 0 : i32
    %c0_i32_0 = arith.constant 0 : i32
    %c0_i32_1 = arith.constant 0 : i32
    return %c0_i32, %c0_i32_0 : i32, i32
  }
  func.func @transform_2(%arg0: i32, %arg1: i32) -> (i32, i32) {
    %c0_i32 = arith.constant 0 : i32
    %c0_i32_0 = arith.constant 0 : i32
    %c0_i32_1 = arith.constant 0 : i32
    return %c0_i32, %c0_i32_0 : i32, i32
  }
  func.func @transform_3(%arg0: i32, %arg1: i32) -> (i32, i32, i32) {
    %c0_i32 = arith.constant 0 : i32
    %c0_i32_0 = arith.constant 0 : i32
    return %arg0, %arg1, %c0_i32 : i32, i32, i32
  }
}

</mosaic_0001>

<llo_original>
// kernel: tpu_custom_call.1
$region0: #{tpu_custom_call.1}
  #allocation0 [shape = 'u32[]', space=smem, size = 0x4, offset = 0x4, fixed_abs, tag = 'smem constant byte address 0x4 - core index']
  #allocation1 [shape = 'u32[144,128]{1,0:T(1,128)}', space=vmem, size = 0x12000, scoped, tag = 'internal scratch']
  #allocation2 [shape = 'f32[2,11,32]{2,1,0:T(8,128)}', space=vmem, size = 0x4000, scoped, tag = 'scratch operand']
  %s0 = inlined_call_operand.hbm [shape: f32[2,8,32], index: 0, kind: input, shape index: {}]
  %s1 = inlined_call_operand.hbm [shape: f32[4,32], index: 1, kind: input, shape index: {}]
  %s2 = inlined_call_operand.vmem [shape: f32[1,32], index: 2, kind: input, shape index: {}]
  %s3 = inlined_call_operand.hbm [shape: f32[2,8,32], index: 3, kind: output, shape index: {}]
  %s4 = sld [smem:[#allocation0]]
  $region34: #{tpu_custom_call.1} parent=0
    _
  %s6 = ssub.s32 1, %s4
  %s7 = scalar_select 0, %s6, %s4
  $region1: #{tpu_custom_call.1} parent=0
    #allocation3 [shape = 'u8[8192]{0}', space=vmem, size = 0x2000, scoped, tag = 'input window, operand 0, single buffered']
    #allocation4 [shape = 's32[1]{0}', space=sflag, size = 0x4, scoped, tag = 'scoped memory for tpu_custom_call.1']
    #allocation5 [shape = 's32[1]{0}', space=sflag, size = 0x4, scoped, tag = 'scoped memory for tpu_custom_call.1']
    #allocation6 [shape = 'u8[2048]{0}', space=vmem, size = 0x800, scoped, tag = 'input window, operand 1, single buffered']
    #allocation7 [shape = 's32[1]{0}', space=sflag, size = 0x4, scoped, tag = 'scoped memory for tpu_custom_call.1']
    #allocation8 [shape = 'u8[8192]{0}', space=vmem, size = 0x2000, scoped, tag = 'output window, operand 0, single buffered']
    %8 = vsyncpa [#allocation4], 0
    %9 = vsyncpa [#allocation7], 0
    %10 = vsyncpa [#allocation5], 0
    // Predicated region
    $region2: #{tpu_custom_call.1} parent=1 // pred_check
      _
    $region3: #{tpu_custom_call.1} parent=1 // pred_check_branch
      %12 = sbr.rel (0) target = $region5
    $region4: #{tpu_custom_call.1} parent=1 // pred_region
      %s14 = ssub.s32 256, 256
      %15 = vsyncadd [#allocation4], %s14
      %s16 = sshll.u32 [#allocation3], 4
      %s17 = int_to_ptr.vmem [resolvable:$true] %s16
      %22 = dma.hbm_to_vmem [thread:$0]  %s0, 256, %s17, [#allocation4], 128, 128, 8
    $region5: #{tpu_custom_call.1} parent=1 // pred_fallthru
      _
    // Predicated region
    $region6: #{tpu_custom_call.1} parent=1 // pred_check
      _
    $region7: #{tpu_custom_call.1} parent=1 // pred_check_branch
      %24 = sbr.rel (0) target = $region9
    $region8: #{tpu_custom_call.1} parent=1 // pred_region
      %s26 = ssub.s32 64, 64
      %27 = vsyncadd [#allocation7], %s26
      %s29 = sshll.u32 [#allocation6], 4
      %s30 = int_to_ptr.vmem [resolvable:$true] %s29
      %32 = dma.hbm_to_vmem [thread:$0]  %s1, 64, %s30, [#allocation7]
    $region9: #{tpu_custom_call.1} parent=1 // pred_fallthru
      _
    // Predicated region
    $region10: #{tpu_custom_call.1} parent=1 // pred_check
      _
    $region11: #{tpu_custom_call.1} parent=1 // pred_check_branch
      %34 = sbr.rel (0) target = $region13
    $region12: #{tpu_custom_call.1} parent=1 // pred_region
      _
    $region13: #{tpu_custom_call.1} parent=1 // pred_fallthru
      _
    // Predicated region
    $region14: #{tpu_custom_call.1} parent=1 // pred_check
      _
    $region15: #{tpu_custom_call.1} parent=1 // pred_check_branch
      %36 = sbr.rel (0) target = $region17
    $region16: #{tpu_custom_call.1} parent=1 // pred_region
      %37 = dma.done [#allocation4], 256
    $region17: #{tpu_custom_call.1} parent=1 // pred_fallthru
      _
    // Predicated region
    $region18: #{tpu_custom_call.1} parent=1 // pred_check
      _
    $region19: #{tpu_custom_call.1} parent=1 // pred_check_branch
      %39 = sbr.rel (0) target = $region21
    $region20: #{tpu_custom_call.1} parent=1 // pred_region
      %40 = dma.done [#allocation7], 64
    $region21: #{tpu_custom_call.1} parent=1 // pred_fallthru
      _
    %p41 = scmp.eq.s32.totalorder 0, 0
    // Predicated region
    $region22: #{tpu_custom_call.1} parent=1 // pred_check
      %p42 = pneg %p41
    $region23: #{tpu_custom_call.1} parent=1 // pred_check_branch
      %44 = sbr.rel (%p42) target = $region25
    $region24: #{tpu_custom_call.1} parent=1 // pred_region
      %vm45 = vcmask 256000
      %46 = vst.msk [vmem:[#allocation2] sm:$0x7] %vm45, 0.0
      %47 = vst.msk [vmem:[#allocation2 + $0x10] sm:$0x7] %vm45, 0.0
    $region25: #{tpu_custom_call.1} parent=1 // pred_fallthru
      _
    %v48 = vld [vmem:[#allocation3] sm:$0xff]
    %v49 = vld [vmem:[#allocation3 + $0x8] sm:$0xff]
    %vm50 = vcmask 261120
    %51 = vst.msk [vmem:[#allocation2 + $0x3] sm:$0xff] %vm50, %v48
    %52 = vst.msk [vmem:[#allocation2 + $0x13] sm:$0xff] %vm50, %v49
    %v53 = vld [vmem:[#allocation6] sm:$0xf]
    %v54 = vld [vmem:[#allocation2] sm:$0xff]
    %v55 = vld [vmem:[#allocation2 + $0x10] sm:$0xff]
    %v56 = vlaneseq
    %v57 = vshrl.u32 %v56, 7
    %v58 = vsub.s32 0, %v57
    %v59 = vrot.slane %v53, %v58
    %v60 = vmul.f32 %v54, %v59
    %v61 = vmul.f32 %v55, %v59
    %v62 = vadd.f32 %v60, 0.0
    %v63 = vadd.f32 %v61, 0.0
    %v64 = vld [vmem:[#allocation2 + $0x1] sm:$0xff]
    %v65 = vld [vmem:[#allocation2 + $0x11] sm:$0xff]
    %v66 = vlaneseq
    %v67 = vshrl.u32 %v66, 7
    %v68 = vsub.s32 1, %v67
    %v69 = vrot.slane %v53, %v68
    %v70 = vmul.f32 %v64, %v69
    %v71 = vmul.f32 %v65, %v69
    %v72 = vadd.f32 %v62, %v70
    %v73 = vadd.f32 %v63, %v71
    %v74 = vld [vmem:[#allocation2 + $0x2] sm:$0xff]
    %v75 = vld [vmem:[#allocation2 + $0x12] sm:$0xff]
    %v76 = vlaneseq
    %v77 = vshrl.u32 %v76, 7
    %v78 = vsub.s32 2, %v77
    %v79 = vrot.slane %v53, %v78
    %v80 = vmul.f32 %v74, %v79
    %v81 = vmul.f32 %v75, %v79
    %v82 = vadd.f32 %v72, %v80
    %v83 = vadd.f32 %v73, %v81
    %v84 = vld [vmem:[#allocation2 + $0x3] sm:$0xff]
    %v85 = vld [vmem:[#allocation2 + $0x13] sm:$0xff]
    %v86 = vlaneseq
    %v87 = vshrl.u32 %v86, 7
    %v88 = vsub.s32 3, %v87
    %v89 = vrot.slane %v53, %v88
    %v90 = vmul.f32 %v84, %v89
    %v91 = vmul.f32 %v85, %v89
    %v92 = vadd.f32 %v82, %v90
    %v93 = vadd.f32 %v83, %v91
    %v94 = vld [vmem:[%s2] sm:$0x1]
    %v96 = vlaneseq
    %v97 = vshrl.u32 %v96, 7
    %v98 = vsub.s32 0, %v97
    %v99 = vrot.slane %v94, %v98
    %v101 = vadd.f32 %v92, %v99
    %v102 = vadd.f32 %v93, %v99
    %103 = vst.msk [vmem:[#allocation8] sm:$0xff] %vm50, %v101
    %104 = vst.msk [vmem:[#allocation8 + $0x8] sm:$0xff] %vm50, %v102
    %v105 = vld [vmem:[#allocation2 + $0x8] sm:$0x7]
    %v106 = vld [vmem:[#allocation2 + $0x18] sm:$0x7]
    %vm107 = vcmask 256000
    %108 = vst.msk [vmem:[#allocation2] sm:$0x7] %vm107, %v105
    %109 = vst.msk [vmem:[#allocation2 + $0x10] sm:$0x7] %vm107, %v106
    // Predicated region
    $region26: #{tpu_custom_call.1} parent=1 // pred_check
      _
    $region27: #{tpu_custom_call.1} parent=1 // pred_check_branch
      %111 = sbr.rel (0) target = $region29
    $region28: #{tpu_custom_call.1} parent=1 // pred_region
      %s113 = ssub.s32 256, 256
      %114 = vsyncadd [#allocation5], %s113
      %s115 = sshll.u32 [#allocation8], 4
      %s116 = int_to_ptr.vmem [resolvable:$true] %s115
      %121 = dma.vmem_to_hbm [thread:$0]  %s116, 256, %s3, [#allocation5], 128, 128, 8
    $region29: #{tpu_custom_call.1} parent=1 // pred_fallthru
      _
    // Predicated region
    $region30: #{tpu_custom_call.1} parent=1 // pred_check
      _
    $region31: #{tpu_custom_call.1} parent=1 // pred_check_branch
      %123 = sbr.rel (0) target = $region33
    $region32: #{tpu_custom_call.1} parent=1 // pred_region
      %124 = dma.done [#allocation5], 256
    $region33: #{tpu_custom_call.1} parent=1 // pred_fallthru
      _
    %125 = vsyncpa [#allocation4], 1
    %126 = vsyncpa [#allocation7], 1
    %127 = vsyncpa [#allocation5], 1

</llo_original>
